<compile_context>
chip_gen: v6e
topology: v6e:2x2x1
jax: 0.10.0
libtpu: 0.0.40
codegen_flags: <defaults>
</compile_context>

<pallas_src>
import jax
import jax.numpy as jnp
from jax.experimental import pallas as pl
from jax.experimental.pallas import tpu as pltpu

# ----- problem sizes (from the PyTorch module) ------------------------------
N = 1
C_IN = 3
C_OUT = 3
K = 5
H = 12
W = 12
OH = H - K + 1   # 8
OW = W - K + 1   # 8
EPS = 1e-5

KDIM = C_IN * K * K          # 75 contraction taps
GAMMA_COL = KDIM             # column 75 of the params slab
BETA_COL = KDIM + 1          # column 76 of the params slab
KPAD = 80                    # next sublane(8) multiple >= KDIM + 2
PIX = N * OH * OW            # 64 output pixels (= BN reduction count)


def conv_bn_relu_kernel(wp_ref, p_ref, o_ref):
    """One MXU matmul + batched BN stats + ReLU on a lane-dense (3, 64) slab.

    wp_ref : VMEM (C_OUT, KPAD)  cols 0..74 = conv weights, col 75 = gamma,
                                 col 76 = beta, cols 77..79 = 0
    p_ref  : VMEM (KPAD, PIX)    im2col patches, rows 75..79 = 0
    o_ref  : VMEM (C_OUT, PIX)   output slab (reshaped to NCHW by wrapper)
    """
    # ----- convolution: single MXU pass, result is (C_OUT, PIX) -------------
    # Patch rows >= KDIM are zero, so the gamma/beta columns of wp_ref
    # contribute nothing to the contraction.
    acc = jnp.dot(wp_ref[...], p_ref[...], preferred_element_type=jnp.float32)

    # NOTE: the Conv2d bias is intentionally omitted: the batch-mean
    # subtraction below cancels any per-channel constant exactly.

    gamma = wp_ref[:, GAMMA_COL:GAMMA_COL + 1]    # (3, 1)
    beta = wp_ref[:, BETA_COL:BETA_COL + 1]       # (3, 1)

    # ----- BatchNorm (training mode): per-channel batch mean / biased var ---
    inv_count = 1.0 / float(PIX)
    mean = jnp.sum(acc, axis=-1, keepdims=True) * inv_count        # (3,1)
    centered = acc - mean
    var = jnp.sum(centered * centered, axis=-1, keepdims=True) * inv_count
    inv_std = jax.lax.rsqrt(var + EPS)
    y = gamma * (centered * inv_std) + beta

    # ----- ReLU + store ------------------------------------------------------
    o_ref[...] = jnp.maximum(y, 0.0)


@jax.jit
def conv_bn_relu(x, w, gamma, beta):
    """Full forward pass; im2col/pad/reshape fused with the kernel call."""
    x = x.astype(jnp.float32)

    # im2col via XLA: (N, C_IN*K*K, OH, OW), channel-major (ci, kh, kw) order
    # which matches w.reshape(C_OUT, C_IN*K*K).
    patches = jax.lax.conv_general_dilated_patches(
        x, (K, K), (1, 1), "VALID",
        dimension_numbers=("NCHW", "OIHW", "NCHW"))
    patches = patches.reshape(KDIM, PIX)                      # (75, 64)
    patches = jnp.pad(patches, ((0, KPAD - KDIM), (0, 0)))    # zero rows 75..79

    # Pack conv weights + gamma + beta into one (3, 80) params slab -> 1 DMA.
    w2d = w.reshape(C_OUT, KDIM).astype(jnp.float32)
    params = jnp.concatenate(
        [w2d,
         gamma.reshape(C_OUT, 1).astype(jnp.float32),
         beta.reshape(C_OUT, 1).astype(jnp.float32),
         jnp.zeros((C_OUT, KPAD - KDIM - 2), jnp.float32)],
        axis=1)                                               # (3, 80)

    out2d = pl.pallas_call(
        conv_bn_relu_kernel,
        out_shape=jax.ShapeDtypeStruct((C_OUT, PIX), jnp.float32),
        in_specs=[
            pl.BlockSpec(memory_space=pltpu.MemorySpace.VMEM),   # params slab
            pl.BlockSpec(memory_space=pltpu.MemorySpace.VMEM),   # patches slab
        ],
        out_specs=pl.BlockSpec(memory_space=pltpu.MemorySpace.VMEM),
    )(params, patches)

    # back to NCHW (N == 1 here)
    return out2d.reshape(N, C_OUT, OH, OW)


def reference(x, w, b, gamma, beta):
    """Pure-JAX reference of the module forward (training-mode BN, WITH bias)."""
    conv = jax.lax.conv_general_dilated(
        x, w, window_strides=(1, 1), padding="VALID",
        dimension_numbers=("NCHW", "OIHW", "NCHW"))
    conv = conv + b[None, :, None, None]
    mean = jnp.mean(conv, axis=(0, 2, 3), keepdims=True)
    var = jnp.mean((conv - mean) ** 2, axis=(0, 2, 3), keepdims=True)
    y = (conv - mean) * jax.lax.rsqrt(var + EPS)
    y = y * gamma[None, :, None, None] + beta[None, :, None, None]
    return jnp.maximum(y, 0.0)


if __name__ == "__main__":
    key = jax.random.PRNGKey(0)
    kx, kw, kb = jax.random.split(key, 3)

    # Input: same shape as the PyTorch script's x6 = torch.randn(1, 3, 12, 12)
    x = jax.random.normal(kx, (N, C_IN, H, W), dtype=jnp.float32)

    # Deterministic parameter init (Conv2d-style uniform fan-in bound).
    bound = 1.0 / (C_IN * K * K) ** 0.5
    w = jax.random.uniform(kw, (C_OUT, C_IN, K, K), jnp.float32, -bound, bound)
    b = jax.random.uniform(kb, (C_OUT,), jnp.float32, -bound, bound)
    gamma = jnp.ones((C_OUT,), jnp.float32)   # BatchNorm2d default weight
    beta = jnp.zeros((C_OUT,), jnp.float32)   # BatchNorm2d default bias

    # TODO(synk): running_mean/running_var buffer updates of training-mode
    # BatchNorm2d are not produced (forward output only). If exported, the
    # batch mean must be re-offset by the conv bias b that the kernel drops.

    out = conv_bn_relu(x, w, gamma, beta)
    out = jax.block_until_ready(out)

    # Reference includes the conv bias; the kernel drops it (cancelled by BN).
    ref = reference(x, w, b, gamma, beta)
    assert out.shape == (N, C_OUT, OH, OW)
    assert jnp.allclose(out, ref, atol=1e-4, rtol=1e-4), "mismatch vs JAX reference"

    print("KERNEL_OK")
</pallas_src>

<mosaic_0001>
module attributes {stable_mosaic.version = 11 : i64} {
  func.func @conv_bn_relu_kernel(%arg0: memref<3x80xf32, #tpu.memory_space<vmem>>, %arg1: memref<80x64xf32, #tpu.memory_space<vmem>>, %arg2: memref<3x64xf32, #tpu.memory_space<vmem>>) attributes {dimension_semantics = [], scalar_prefetch = 0 : i64, scratch_operands = 0 : i64, tpu.core_type = #tpu.core_type<tc>} {
    %c0 = arith.constant 0 : index
    %c0_0 = arith.constant 0 : index
    %0 = vector.load %arg0[%c0, %c0_0] : memref<3x80xf32, #tpu.memory_space<vmem>>, vector<3x80xf32>
    %c0_1 = arith.constant 0 : index
    %c0_2 = arith.constant 0 : index
    %1 = vector.load %arg1[%c0_1, %c0_2] : memref<80x64xf32, #tpu.memory_space<vmem>>, vector<80x64xf32>
    %cst = arith.constant dense<0.000000e+00> : vector<3x64xf32>
    %2 = tpu.matmul %0, %1, %cst {dimension_numbers = #tpu.dot_dimension_numbers<[1], [0], [0], [1], [0, 0, 1, 1], [], []>} : vector<3x80xf32>, vector<80x64xf32>, vector<3x64xf32> -> vector<3x64xf32>
    %c0_3 = arith.constant 0 : index
    %c75 = arith.constant 75 : index
    %3 = vector.load %arg0[%c0_3, %c75] : memref<3x80xf32, #tpu.memory_space<vmem>>, vector<3x1xf32>
    %c0_4 = arith.constant 0 : index
    %c76 = arith.constant 76 : index
    %4 = vector.load %arg0[%c0_4, %c76] : memref<3x80xf32, #tpu.memory_space<vmem>>, vector<3x1xf32>
    %cst_5 = arith.constant dense<0.000000e+00> : vector<3xf32>
    %5 = vector.multi_reduction <add>, %2, %cst_5 [1] : vector<3x64xf32> to vector<3xf32>
    %6 = vector.shape_cast %5 : vector<3xf32> to vector<3x1xf32>
    %cst_6 = arith.constant 1.562500e-02 : f32
    %7 = vector.broadcast %cst_6 : f32 to vector<3x1xf32>
    %8 = arith.mulf %6, %7 : vector<3x1xf32>
    %9 = vector.broadcast %8 : vector<3x1xf32> to vector<3x64xf32>
    %10 = arith.subf %2, %9 : vector<3x64xf32>
    %11 = arith.mulf %10, %10 : vector<3x64xf32>
    %cst_7 = arith.constant dense<0.000000e+00> : vector<3xf32>
    %12 = vector.multi_reduction <add>, %11, %cst_7 [1] : vector<3x64xf32> to vector<3xf32>
    %13 = vector.shape_cast %12 : vector<3xf32> to vector<3x1xf32>
    %cst_8 = arith.constant 1.562500e-02 : f32
    %14 = vector.broadcast %cst_8 : f32 to vector<3x1xf32>
    %15 = arith.mulf %13, %14 : vector<3x1xf32>
    %cst_9 = arith.constant 9.99999974E-6 : f32
    %16 = vector.broadcast %cst_9 : f32 to vector<3x1xf32>
    %17 = arith.addf %15, %16 : vector<3x1xf32>
    %18 = math.rsqrt %17 : vector<3x1xf32>
    %19 = vector.broadcast %18 : vector<3x1xf32> to vector<3x64xf32>
    %20 = arith.mulf %10, %19 : vector<3x64xf32>
    %21 = vector.broadcast %3 : vector<3x1xf32> to vector<3x64xf32>
    %22 = arith.mulf %21, %20 : vector<3x64xf32>
    %23 = vector.broadcast %4 : vector<3x1xf32> to vector<3x64xf32>
    %24 = arith.addf %22, %23 : vector<3x64xf32>
    %cst_10 = arith.constant 0.000000e+00 : f32
    %25 = vector.broadcast %cst_10 : f32 to vector<3x64xf32>
    %26 = arith.maximumf %24, %25 : vector<3x64xf32>
    %c0_11 = arith.constant 0 : index
    %c0_12 = arith.constant 0 : index
    %27 = vector.load %arg2[%c0_11, %c0_12] : memref<3x64xf32, #tpu.memory_space<vmem>>, vector<3x64xf32>
    tpu.vector_store %arg2[%c0_11, %c0_12], %26 {strides = array<i32>} : memref<3x64xf32, #tpu.memory_space<vmem>>, vector<3x64xf32>,
    return
  }
}

</mosaic_0001>

<llo_original>
// kernel: conv_bn_relu.1
$region0: #{conv_bn_relu.1}
  #allocation0 [shape = 'u32[]', space=smem, size = 0x4, offset = 0x4, fixed_abs, tag = 'smem constant byte address 0x4 - core index']
  #allocation1 [shape = 'u32[144,128]{1,0:T(1,128)}', space=vmem, size = 0x12000, scoped, tag = 'internal scratch']
  %s0 = inlined_call_operand.vmem [shape: f32[3,80], index: 0, kind: input, shape index: {}]
  %s1 = inlined_call_operand.vmem [shape: f32[80,64], index: 1, kind: input, shape index: {}]
  %s2 = inlined_call_operand.vmem [shape: f32[3,64], index: 2, kind: output, shape index: {}]
  %s3 = sld [smem:[#allocation0]]
  $region18: #{conv_bn_relu.1} parent=0
    _
  %s5 = ssub.s32 1, %s3
  %s6 = scalar_select 0, %s5, %s3
  // Predicated region
  $region2: #{conv_bn_relu.1} parent=0 // pred_check
    _
  $region3: #{conv_bn_relu.1} parent=0 // pred_check_branch
    %8 = sbr.rel (0) target = $region5
  $region4: #{conv_bn_relu.1} parent=0 // pred_region
    _
  $region5: #{conv_bn_relu.1} parent=0 // pred_fallthru
    _
  // Predicated region
  $region6: #{conv_bn_relu.1} parent=0 // pred_check
    _
  $region7: #{conv_bn_relu.1} parent=0 // pred_check_branch
    %10 = sbr.rel (0) target = $region9
  $region8: #{conv_bn_relu.1} parent=0 // pred_region
    _
  $region9: #{conv_bn_relu.1} parent=0 // pred_fallthru
    _
  %v11 = vld [vmem:[%s0] sm:$0x7]
  %v12 = vld [vmem:[%s1] sm:$0xff]
  %v13 = vld [vmem:[%s1 + $0x8] sm:$0xff]
  %v14 = vld [vmem:[%s1 + $0x10] sm:$0xff]
  %v15 = vld [vmem:[%s1 + $0x18] sm:$0xff]
  %v16 = vld [vmem:[%s1 + $0x20] sm:$0xff]
  %v17 = vld [vmem:[%s1 + $0x28] sm:$0xff]
  %v18 = vld [vmem:[%s1 + $0x30] sm:$0xff]
  %v19 = vld [vmem:[%s1 + $0x38] sm:$0xff]
  %v20 = vld [vmem:[%s1 + $0x40] sm:$0xff]
  %v21 = vld [vmem:[%s1 + $0x48] sm:$0xff]
  %vm22 = vcmask 654336
  %v24 = vsel %vm22, %v11, 0
  %26 = vmatprep.subr.mxu0 0.0
  %27 = vmatpush1.msra.mxu0 0.0
  %28 = vmatprep.subr.mxu0 0.0
  %29 = vmatpush1.msra.mxu0 0.0
  %30 = vmatprep.subr.mxu0 0.0
  %31 = vmatpush1.msra.mxu0 0.0
  %32 = vmatprep.subr.mxu0 0.0
  %33 = vmatpush1.msra.mxu0 0.0
  %34 = vmatprep.subr.mxu0 0.0
  %35 = vmatpush1.msra.mxu0 0.0
  %36 = vmatprep.subr.mxu0 0.0
  %37 = vmatpush1.msra.mxu0 0.0
  %38 = vmatprep.subr.mxu0 0.0
  %39 = vmatpush1.msra.mxu0 %v21
  %40 = vmatprep.subr.mxu0 0.0
  %41 = vmatpush1.msra.mxu0 %v20
  %42 = vmatprep.subr.mxu0 0.0
  %43 = vmatpush1.msra.mxu0 %v19
  %44 = vmatprep.subr.mxu0 0.0
  %45 = vmatpush1.msra.mxu0 %v18
  %46 = vmatprep.subr.mxu0 0.0
  %47 = vmatpush1.msra.mxu0 %v17
  %48 = vmatprep.subr.mxu0 0.0
  %49 = vmatpush1.msra.mxu0 %v16
  %50 = vmatprep.subr.mxu0 0.0
  %51 = vmatpush1.msra.mxu0 %v15
  %52 = vmatprep.subr.mxu0 0.0
  %53 = vmatpush1.msra.mxu0 %v14
  %54 = vmatprep.subr.mxu0 0.0
  %55 = vmatpush1.msra.mxu0 %v13
  %56 = vmatprep.subr.mxu0 0.0
  %57 = vmatpush1.msra.mxu0 %v12
  %58 = vmatprep.subr.mxu0 0.0
  %59 = vmatpush2.msra.mxu0 0.0
  %60 = vmatprep.subr.mxu0 0.0
  %61 = vmatpush2.msra.mxu0 0.0
  %62 = vmatprep.subr.mxu0 0.0
  %63 = vmatpush2.msra.mxu0 0.0
  %64 = vmatprep.subr.mxu0 0.0
  %65 = vmatpush2.msra.mxu0 0.0
  %66 = vmatprep.subr.mxu0 0.0
  %67 = vmatpush2.msra.mxu0 0.0
  %68 = vmatprep.subr.mxu0 0.0
  %69 = vmatpush2.msra.mxu0 0.0
  %70 = vmatprep.subr.mxu0 0.0
  %71 = vmatpush2.msra.mxu0 0.0
  %72 = vmatprep.subr.mxu0 0.0
  %73 = vmatpush2.msra.mxu0 0.0
  %74 = vmatprep.subr.mxu0 0.0
  %75 = vmatpush2.msra.mxu0 0.0
  %76 = vmatprep.subr.mxu0 0.0
  %77 = vmatpush2.msra.mxu0 0.0
  %78 = vmatprep.subr.mxu0 0.0
  %79 = vmatpush2.msra.mxu0 0.0
  %80 = vmatprep.subr.mxu0 0.0
  %81 = vmatpush2.msra.mxu0 0.0
  %82 = vmatprep.subr.mxu0 0.0
  %83 = vmatpush2.msra.mxu0 0.0
  %84 = vmatprep.subr.mxu0 0.0
  %85 = vmatpush2.msra.mxu0 0.0
  %86 = vmatprep.subr.mxu0 0.0
  %87 = vmatpush2.msra.mxu0 0.0
  %88 = vmatprep.subr.mxu0 0.0
  %89 = vmatpush2.msra.mxu0 0.0
  %90 = vmatprep.mubr.f32.mxu0 0.0
  %91 = vmatmul.mubr.f32.gmra.mxu0 %v24
  %v92 = vpop.f32.mrf.mxu0
  %v93 = vadd.f32 0.0, %v92
  %v94 = vpop.f32.mrf.mxu0
  %95 = vdwg.mxu0
  %vm96 = vcmask 518144
  %v97 = vsel %vm96, %v93, 0.0
  %98 = vadd.xlane.f32.xlu0 %v97
  %v99 = vpop.xlane.xlu0 %98
  %v100 = vmul.f32 %v99, 0.015625
  %v101 = vsub.f32 %v93, %v100
  %v102 = vmul.f32 %v101, %v101
  %v103 = vsel %vm96, %v102, 0.0
  %104 = vadd.xlane.f32.xlu0 %v103
  %v105 = vpop.xlane.xlu0 %104
  %v106 = vmul.f32 %v105, 0.015625
  %v107 = vadd.f32 %v106, 1e-05
  %v108 = vrsqrt.pop %v107
  %v109 = vmul.f32 %v101, %v108
  %110 = vset.pattern.permute.xlu0 75
  %111 = vperm.xlu0 %110, %v11
  %v112 = vpop.permute.xlu0 %111
  %v114 = vmul.f32 %v112, %v109
  %115 = vset.pattern.permute.xlu0 76
  %116 = vperm.xlu0 %115, %v11
  %v117 = vpop.permute.xlu0 %116
  %v119 = vadd.f32 %v114, %v117
  %v120 = vmax.f32 %v119, 0.0
  %121 = vst.msk [vmem:[%s2] sm:$0x7] %vm96, %v120
  // Predicated region
  $region10: #{conv_bn_relu.1} parent=0 // pred_check
    _
  $region11: #{conv_bn_relu.1} parent=0 // pred_check_branch
    %123 = sbr.rel (0) target = $region13
  $region12: #{conv_bn_relu.1} parent=0 // pred_region
    _
  $region13: #{conv_bn_relu.1} parent=0 // pred_fallthru
    _
  // Predicated region
  $region14: #{conv_bn_relu.1} parent=0 // pred_check
    _
  $region15: #{conv_bn_relu.1} parent=0 // pred_check_branch
    %125 = sbr.rel (0) target = $region17
  $region16: #{conv_bn_relu.1} parent=0 // pred_region
    _
  $region17: #{conv_bn_relu.1} parent=0 // pred_fallthru
    _

</llo_original>
